<compile_context>
chip_gen: v7x
topology: tpu7x:2x2x1
jax: 0.10.0
libtpu: 0.0.40
codegen_flags: <defaults>
</compile_context>

<pallas_src>
import math

import jax
import jax.numpy as jnp
from jax.experimental import pallas as pl
from jax.experimental.pallas import tpu as pltpu


# ----------------------- P == 1 (scalar weight) path -----------------------

def _prelu_scalar_kernel(w_ref, x_ref, o_ref):
    # w_ref: (1,) weight in SMEM; x_ref / o_ref: (TM, LANE) tiles in VMEM.
    x = x_ref[...]
    w = w_ref[0].astype(x.dtype)
    o_ref[...] = jnp.where(x > 0, x, w * x)


def _prelu_scalar(x, weight):
    orig_shape = x.shape
    dtype = x.dtype
    total = math.prod(orig_shape)

    LANE = 512                      # lane-dense last dim (multiple of 128)
    pad = (-total) % LANE
    flat = x.reshape(total)
    if pad:
        flat = jnp.pad(flat, (0, pad))
    rows = (total + pad) // LANE

    # ~2 MiB f32 tiles: (1024, 512) f32 = 2 MiB; double-buffered in+out = 8 MiB.
    TM = rows if rows <= 1024 else 1024
    grid = (pl.cdiv(rows, TM),)

    out2d = pl.pallas_call(
        _prelu_scalar_kernel,
        out_shape=jax.ShapeDtypeStruct((rows, LANE), dtype),
        grid=grid,
        in_specs=[
            pl.BlockSpec(memory_space=pltpu.MemorySpace.SMEM),   # scalar weight
            pl.BlockSpec((TM, LANE), lambda i: (i, 0)),
        ],
        out_specs=pl.BlockSpec((TM, LANE), lambda i: (i, 0)),
        compiler_params=pltpu.CompilerParams(
            dimension_semantics=("parallel",)),
    )(weight.astype(jnp.float32).reshape(1), flat.reshape(rows, LANE))

    out = out2d.reshape(rows * LANE)
    if pad:
        out = out[:total]
    return out.reshape(orig_shape)


# -------------------- P == x.shape[-1] (per-lane weight) --------------------

def _prelu_row_kernel(x_ref, w_ref, o_ref):
    # x_ref / o_ref: (TM, W) tiles; w_ref: (1, W) weight row (broadcast over rows).
    x = x_ref[...]
    w = w_ref[...]
    o_ref[...] = jnp.where(x > 0, x, w * x)


def _prelu_rowwise(x, weight):
    orig_shape = x.shape
    dtype = x.dtype
    W = orig_shape[-1]
    M = math.prod(orig_shape[:-1]) if len(orig_shape) > 1 else 1

    x2d = x.reshape(M, W)
    w_row = weight.astype(dtype).reshape(1, W)

    # ~2 MiB row-tile budget, second-to-last block dim a multiple of 8
    # (or the full extent when M is small).
    bytes_per_row = W * jnp.dtype(dtype).itemsize
    tm = max(8, ((2 * 1024 * 1024) // max(bytes_per_row, 1)) // 8 * 8)
    TM = M if M <= tm else tm
    grid = (pl.cdiv(M, TM),)

    out2d = pl.pallas_call(
        _prelu_row_kernel,
        out_shape=jax.ShapeDtypeStruct((M, W), dtype),
        grid=grid,
        in_specs=[
            pl.BlockSpec((TM, W), lambda i: (i, 0)),
            pl.BlockSpec((1, W), lambda i: (0, 0)),
        ],
        out_specs=pl.BlockSpec((TM, W), lambda i: (i, 0)),
        compiler_params=pltpu.CompilerParams(
            dimension_semantics=("parallel",)),
    )(x2d, w_row)
    return out2d.reshape(orig_shape)


# --------------------------------- wrapper ---------------------------------

def prelu(x, weight):
    """PReLU forward: where(x > 0, x, weight * x).

    weight: shape (P,) with P == 1 or P == x.shape[-1] (plain broadcasting
    along the last axis, exactly as the PyTorch module does).
    """
    P = weight.shape[0] if weight.ndim >= 1 else 1
    if P == 1:
        return _prelu_scalar(x, weight.reshape(-1))
    if P != x.shape[-1]:
        raise ValueError(
            f"weight of shape {weight.shape} does not broadcast against "
            f"x last dim {x.shape[-1]}")
    return _prelu_rowwise(x, weight)


if __name__ == "__main__":
    # Deterministic parameter init, as in the module's __init__:
    # weight = full((num_parameters,), init) with defaults (1, 0.25).
    num_parameters = 1
    init = 0.25
    weight = jnp.full((num_parameters,), init, dtype=jnp.float32)

    # Small deterministic input: NCHW = (2, 4, 16, 16).
    key = jax.random.PRNGKey(0)
    x = jax.random.normal(key, (2, 4, 16, 16), dtype=jnp.float32)

    # Default module path (P == 1).
    out = jax.block_until_ready(prelu(x, weight))
    ref = jnp.where(x > 0, x, weight * x)
    assert out.shape == x.shape and out.dtype == x.dtype
    assert jnp.allclose(out, ref, atol=1e-6, rtol=1e-6)

    # Also exercise the per-lane-weight path (num_parameters == last dim).
    weight_w = (jnp.arange(x.shape[-1], dtype=jnp.float32) * 0.05) - 0.3
    out_w = jax.block_until_ready(prelu(x, weight_w))
    ref_w = jnp.where(x > 0, x, weight_w * x)
    assert jnp.allclose(out_w, ref_w, atol=1e-6, rtol=1e-6)

    print("KERNEL_OK")
</pallas_src>

<mosaic_0001>
module attributes {stable_mosaic.version = 11 : i64} {
  func.func @_prelu_scalar_kernel(%arg0: i32, %arg1: memref<1xf32, #tpu.memory_space<smem>>, %arg2: memref<4x512xf32, #tpu.memory_space<vmem>>, %arg3: memref<4x512xf32, #tpu.memory_space<vmem>>) attributes {dimension_semantics = [#tpu.dimension_semantics<parallel>], iteration_bounds = array<i64: 1>, scalar_prefetch = 0 : i64, scratch_operands = 0 : i64, tpu.core_type = #tpu.core_type<tc>, window_params = [{transform_indices = @transform_0, window_bounds = array<i64: 1>}, {transform_indices = @transform_1, window_bounds = array<i64: 4, 512>}, {transform_indices = @transform_2, window_bounds = array<i64: 4, 512>}]} {
    %c0 = arith.constant 0 : index
    %c0_0 = arith.constant 0 : index
    %0 = vector.load %arg2[%c0, %c0_0] : memref<4x512xf32, #tpu.memory_space<vmem>>, vector<4x512xf32>
    %c0_1 = arith.constant 0 : index
    %1 = memref.load %arg1[%c0_1] : memref<1xf32, #tpu.memory_space<smem>>
    %cst = arith.constant 0.000000e+00 : f32
    %2 = vector.broadcast %cst : f32 to vector<4x512xf32>
    %3 = arith.cmpf ogt, %0, %2 : vector<4x512xf32>
    %4 = vector.broadcast %1 : f32 to vector<4x512xf32>
    %5 = arith.mulf %4, %0 : vector<4x512xf32>
    %6 = arith.select %3, %0, %5 : vector<4x512xi1>, vector<4x512xf32>
    %c0_2 = arith.constant 0 : index
    %c0_3 = arith.constant 0 : index
    %7 = vector.load %arg3[%c0_2, %c0_3] : memref<4x512xf32, #tpu.memory_space<vmem>>, vector<4x512xf32>
    tpu.vector_store %arg3[%c0_2, %c0_3], %6 {strides = array<i32>} : memref<4x512xf32, #tpu.memory_space<vmem>>, vector<4x512xf32>,
    return
  }
  func.func @transform_0(%arg0: i32) -> i32 {
    %c0_i32 = arith.constant 0 : i32
    %c0_i32_0 = arith.constant 0 : i32
    return %c0_i32 : i32
  }
  func.func @transform_1(%arg0: i32) -> (i32, i32) {
    %c0_i32 = arith.constant 0 : i32
    %c0_i32_0 = arith.constant 0 : i32
    return %arg0, %c0_i32 : i32, i32
  }
  func.func @transform_2(%arg0: i32) -> (i32, i32) {
    %c0_i32 = arith.constant 0 : i32
    %c0_i32_0 = arith.constant 0 : i32
    return %arg0, %c0_i32 : i32, i32
  }
}

</mosaic_0001>

<llo_original>
// kernel: tpu_custom_call.1
$region0: #{tpu_custom_call.1}
  #allocation0 [shape = 'u32[]', space=smem, size = 0x4, offset = 0x4, fixed_abs, tag = 'smem constant byte address 0x4 - core index']
  #allocation1 [shape = 'u32[144,128]{1,0:T(1,128)}', space=vmem, size = 0x12000, scoped, tag = 'internal scratch']
  #allocation2 [shape = 'f32[1]{0:T(128)S(6)}', space=smem, size = 0x200, scoped, tag = 'scoped memory for tpu_custom_call.1']
  %s0 = inlined_call_operand.<no memory space> [shape: f32[1], index: 0, kind: input, shape index: {}]
  %s1 = inlined_call_operand.hbm [shape: f32[4,512], index: 1, kind: input, shape index: {}]
  %s2 = inlined_call_operand.hbm [shape: f32[4,512], index: 2, kind: output, shape index: {}]
  %s3 = sld [smem:[#allocation0]]
  $region22: #{tpu_custom_call.1} parent=0
    _
  %s5 = ssub.s32 1, %s3
  %s6 = scalar_select 0, %s5, %s3
  %7 = sst [smem:[#allocation2]] %s0
  $region1: #{tpu_custom_call.1} parent=0
    #allocation3 [shape = 'u8[8192]{0}', space=vmem, size = 0x2000, scoped, tag = 'input window, operand 1, single buffered']
    #allocation4 [shape = 's32[1]{0}', space=sflag, size = 0x4, scoped, tag = 'scoped memory for tpu_custom_call.1']
    #allocation5 [shape = 's32[1]{0}', space=sflag, size = 0x4, scoped, tag = 'scoped memory for tpu_custom_call.1']
    #allocation6 [shape = 'u8[8192]{0}', space=vmem, size = 0x2000, scoped, tag = 'output window, operand 0, single buffered']
    %8 = vsyncpa [#allocation4], 0
    %9 = vsyncpa [#allocation5], 0
    // Predicated region
    $region2: #{tpu_custom_call.1} parent=1 // pred_check
      _
    $region3: #{tpu_custom_call.1} parent=1 // pred_check_branch
      %11 = sbr.rel (0) target = $region5
    $region4: #{tpu_custom_call.1} parent=1 // pred_region
      _
    $region5: #{tpu_custom_call.1} parent=1 // pred_fallthru
      _
    // Predicated region
    $region6: #{tpu_custom_call.1} parent=1 // pred_check
      _
    $region7: #{tpu_custom_call.1} parent=1 // pred_check_branch
      %13 = sbr.rel (0) target = $region9
    $region8: #{tpu_custom_call.1} parent=1 // pred_region
      %s15 = ssub.s32 256, 256
      %16 = vsyncadd [#allocation4], %s15
      %s18 = sshll.u32 [#allocation3], 4
      %s19 = int_to_ptr.vmem [resolvable:$true] %s18
      %21 = dma.hbm_to_vmem [thread:$0]  %s1, 256, %s19, [#allocation4]
    $region9: #{tpu_custom_call.1} parent=1 // pred_fallthru
      _
    // Predicated region
    $region10: #{tpu_custom_call.1} parent=1 // pred_check
      _
    $region11: #{tpu_custom_call.1} parent=1 // pred_check_branch
      %23 = sbr.rel (0) target = $region13
    $region12: #{tpu_custom_call.1} parent=1 // pred_region
      %24 = dma.done [#allocation4], 256
    $region13: #{tpu_custom_call.1} parent=1 // pred_fallthru
      _
    %v25 = vld [vmem:[#allocation3] sm:$0xff]
    %v26 = vld [vmem:[#allocation3 + $0x8] sm:$0xff]
    %s27 = sld [smem:[#allocation2]]
    %vm28 = vcmp.gt.f32.partialorder %v25, 0.0
    %vm29 = vcmp.gt.f32.partialorder %v26, 0.0
    %v30 = vstv %s27
    %v31 = vmul.f32 %v30, %v25
    %v32 = vmul.f32 %v30, %v26
    %v33 = vsel %vm28, %v25, %v31
    %v34 = vsel %vm29, %v26, %v32
    %35 = vst [vmem:[#allocation6] sm:$0xff] %v33
    %36 = vst [vmem:[#allocation6 + $0x8] sm:$0xff] %v34
    // Predicated region
    $region14: #{tpu_custom_call.1} parent=1 // pred_check
      _
    $region15: #{tpu_custom_call.1} parent=1 // pred_check_branch
      %38 = sbr.rel (0) target = $region17
    $region16: #{tpu_custom_call.1} parent=1 // pred_region
      %s40 = ssub.s32 256, 256
      %41 = vsyncadd [#allocation5], %s40
      %s43 = sshll.u32 [#allocation6], 4
      %s44 = int_to_ptr.vmem [resolvable:$true] %s43
      %46 = dma.vmem_to_hbm [thread:$0]  %s44, 256, %s2, [#allocation5]
    $region17: #{tpu_custom_call.1} parent=1 // pred_fallthru
      _
    // Predicated region
    $region18: #{tpu_custom_call.1} parent=1 // pred_check
      _
    $region19: #{tpu_custom_call.1} parent=1 // pred_check_branch
      %48 = sbr.rel (0) target = $region21
    $region20: #{tpu_custom_call.1} parent=1 // pred_region
      %49 = dma.done [#allocation5], 256
    $region21: #{tpu_custom_call.1} parent=1 // pred_fallthru
      _
    %50 = vsyncpa [#allocation4], 1
    %51 = vsyncpa [#allocation5], 1

</llo_original>
